<compile_context>
chip_gen: v5e
topology: v5e:2x2
jax: 0.10.0
libtpu: 0.0.40
codegen_flags: <defaults>
</compile_context>

<pallas_src>
import functools

import jax
import jax.numpy as jnp
from jax.experimental import pallas as pl
from jax.experimental.pallas import tpu as pltpu


def _round_up(x, m):
    return ((x + m - 1) // m) * m


def _m2t_kernel(x2t_ref, w2_ref, b2_ref, m2t_ref):
    # One (Wp, tn) column block of m2.T = tanh(W2a @ x2.T + b2a), stored as the
    # bf16 MXU operand of the main kernel's scores matmul (no in-kernel transpose).
    acc = jnp.dot(w2_ref[...], x2t_ref[...], preferred_element_type=jnp.float32)
    m2t_ref[...] = jnp.tanh(acc + b2_ref[...]).astype(jnp.bfloat16)


def _scores_topk_kernel(x1_ref, w1t_ref, b1_ref, m2t_ref, eps_ref, adj_ref,
                        *, alpha, k):
    # m1 row block: (tm, Wp). bf16 MXU operands, fp32 accumulation / elementwise.
    # alpha is already folded into w1t / b1.
    m1 = jnp.tanh(jnp.dot(x1_ref[...], w1t_ref[...],
                          preferred_element_type=jnp.float32) + b1_ref[...])

    scores = jnp.dot(m1.astype(jnp.bfloat16), m2t_ref[...],
                     preferred_element_type=jnp.float32)
    adj = jnp.maximum(jnp.tanh(alpha * scores), 0.0)

    if k:
        # torch adds rand*0.01 purely as a top-k tie breaker; eps_ref carries a
        # deterministic per-column epsilon (total < 0.01) and -1e9 in padded
        # columns so they can never displace a real entry.
        noisy = adj + eps_ref[...]
        work = noisy
        thr = noisy  # overwritten in the first loop iteration (k >= 1 here)
        for i in range(k):
            thr = jnp.max(work, axis=1, keepdims=True)
            if i + 1 < k:  # last suppression pass is never read -> skip it
                work = jnp.where(work >= thr, -jnp.inf, work)
        adj = jnp.where(noisy >= thr, adj, 0.0)

    adj_ref[...] = adj


def graph_directed_a(idx, e1_w, e2_w, w1, b1, w2, b2, *, alpha, k,
                     single_buffer_invariants=True):
    N = int(idx.shape[0])
    W = int(e1_w.shape[1])
    alpha = float(alpha)
    k = int(k)

    # Embedding lookup is a plain gather (wrapper glue); everything else in-kernel.
    x1 = e1_w[idx].astype(jnp.float32)       # (N, W)
    x2 = e2_w[idx].astype(jnp.float32)       # (N, W)

    # Lane / MXU friendly padded sizes.
    Wp = _round_up(W, 128)                   # contraction / feature dim
    Ncp = _round_up(N, 128)                  # output column dim (lane-dense stores)
    N8 = _round_up(N, 8)

    # Generation-dependent row tile: v7x has 64 MiB VMEM per TC -> smaller tm.
    vmem_cap = 64 << 20
    try:
        vmem_cap = int(getattr(pltpu.get_tpu_info(), "vmem_capacity_bytes",
                               vmem_cap))
    except Exception:
        pass
    tm_cap = 128 if vmem_cap <= (64 << 20) else 256
    tm = min(tm_cap, N8)
    Np = pl.cdiv(N8, tm) * tm
    num_blocks = Np // tm

    def pad2(a, rows, cols):
        return jnp.pad(a, ((0, rows - a.shape[0]), (0, cols - a.shape[1])))

    # Fold alpha into the Linear weights / biases (one-time, wrapper-side).
    w1a = (alpha * w1).astype(jnp.float32)
    w2a = (alpha * w2).astype(jnp.float32)
    b1a = (alpha * b1).astype(jnp.float32)
    b2a = (alpha * b2).astype(jnp.float32)

    # bf16 MXU operands; zero padding keeps the math exact (padded feature rows of
    # m2t and padded feature columns of m1 are exactly zero).
    x1p = pad2(x1, Np, Wp).astype(jnp.bfloat16)            # (Np, Wp)
    x2tp = pad2(x2.T, Wp, Ncp).astype(jnp.bfloat16)        # (Wp, Ncp)
    w1tp = pad2(w1a.T, Wp, Wp).astype(jnp.bfloat16)        # (Wp, Wp)
    w2p = pad2(w2a, Wp, Wp).astype(jnp.bfloat16)           # (Wp, Wp)
    b1p = jnp.pad(b1a, (0, Wp - W)).reshape(1, Wp)         # (1, Wp) fp32
    b2p = jnp.pad(b2a, (0, Wp - W)).reshape(Wp, 1)         # (Wp, 1) fp32

    # ---- pre-pass: m2t = tanh(W2a @ x2.T + b2a), computed ONCE, bf16 ----------
    tn = min(512, Ncp)
    m2t = pl.pallas_call(
        _m2t_kernel,
        out_shape=jax.ShapeDtypeStruct((Wp, Ncp), jnp.bfloat16),
        grid=(Ncp // tn,),
        in_specs=[
            pl.BlockSpec((Wp, tn), lambda j: (0, j)),      # x2.T column block
            pl.BlockSpec((Wp, Wp), lambda j: (0, 0)),      # w2 (alpha folded)
            pl.BlockSpec((Wp, 1), lambda j: (0, 0)),       # b2 (alpha folded)
        ],
        out_specs=pl.BlockSpec((Wp, tn), lambda j: (0, j)),
        compiler_params=pltpu.CompilerParams(
            dimension_semantics=("parallel",)),
        cost_estimate=pl.CostEstimate(
            flops=2 * Wp * Wp * Ncp,
            transcendentals=Wp * Ncp,
            bytes_accessed=2 * (Wp * Ncp + Wp * Wp) + 4 * Wp + 2 * Wp * Ncp),
    )(x2tp, w2p, b2p)

    # Tie-break epsilon row: deterministic, strictly increasing over real columns
    # (total < 0.01, mirroring torch's rand*0.01); -1e9 in padded columns.
    # TODO(synk): 0.01/N falls below the fp32 ulp near adj~1.0 once N >~ 1e5.
    col = jnp.arange(Ncp, dtype=jnp.float32)
    eps_row = jnp.where(col < N, col * (0.01 / max(N, 1)),
                        -1e9).reshape(1, Ncp).astype(jnp.float32)

    # Grid-invariant operands: request single buffering when supported.
    def const_spec(shape):
        index_map = lambda i: (0,) * len(shape)
        if single_buffer_invariants:
            return pl.BlockSpec(shape, index_map, pipeline_mode=pl.Buffered(1))
        return pl.BlockSpec(shape, index_map)

    # VMEM budget from the actual live set (double-buffered x1/out, resident
    # invariants, in-kernel fp32 temporaries), with headroom.
    live_bytes = (2 * tm * Wp * 2                 # x1 blocks (bf16, double buffered)
                  + Wp * Wp * 2 + Wp * 4          # w1t + b1
                  + Wp * Ncp * 2 + Ncp * 4        # m2t + eps
                  + 2 * tm * Ncp * 4              # out blocks (fp32, double buffered)
                  + 5 * tm * Ncp * 4              # scores/adj/noisy/work temporaries
                  + tm * Wp * 4)                  # m1 fp32
    vmem_limit = int(1.5 * live_bytes) + (4 << 20)
    vmem_limit = max(vmem_limit, 32 << 20)
    vmem_limit = min(vmem_limit, max(vmem_cap - (8 << 20), 32 << 20))

    kernel = functools.partial(_scores_topk_kernel, alpha=alpha, k=k)

    flops = 2 * Np * Wp * Wp + 2 * Np * Wp * Ncp
    transcendentals = Np * Wp + Np * Ncp
    bytes_accessed = (2 * (Np * Wp + Wp * Wp + Wp * Ncp)
                      + 4 * (Wp + Ncp) + 4 * Np * Ncp)

    out = pl.pallas_call(
        kernel,
        out_shape=jax.ShapeDtypeStruct((Np, Ncp), jnp.float32),
        grid=(num_blocks,),
        in_specs=[
            pl.BlockSpec((tm, Wp), lambda i: (i, 0)),      # x1 row block
            const_spec((Wp, Wp)),                          # w1.T (alpha folded)
            const_spec((1, Wp)),                           # b1   (alpha folded)
            const_spec((Wp, Ncp)),                         # m2t  (precomputed)
            const_spec((1, Ncp)),                          # tie-break epsilon row
        ],
        out_specs=pl.BlockSpec((tm, Ncp), lambda i: (i, 0)),
        compiler_params=pltpu.CompilerParams(
            dimension_semantics=("parallel",),
            vmem_limit_bytes=vmem_limit),
        cost_estimate=pl.CostEstimate(flops=flops,
                                      transcendentals=transcendentals,
                                      bytes_accessed=bytes_accessed),
    )(x1p, w1tp, b1p, m2t, eps_row)

    return out[:N, :N]


if __name__ == "__main__":
    num_nodes = 16      # N
    window_size = 32    # W
    alpha = 3.0
    k = 4

    key = jax.random.PRNGKey(0)
    k1, k2, k3, k4, k5, k6 = jax.random.split(key, 6)

    # Deterministic synthetic parameters (shapes from the module's __init__).
    e1_w = jax.random.normal(k1, (num_nodes, window_size), jnp.float32)
    e2_w = jax.random.normal(k2, (num_nodes, window_size), jnp.float32)
    bound = 1.0 / jnp.sqrt(window_size)
    w1 = jax.random.uniform(k3, (window_size, window_size), jnp.float32, -bound, bound)
    b1 = jax.random.uniform(k4, (window_size,), jnp.float32, -bound, bound)
    w2 = jax.random.uniform(k5, (window_size, window_size), jnp.float32, -bound, bound)
    b2 = jax.random.uniform(k6, (window_size,), jnp.float32, -bound, bound)

    idx = jnp.arange(num_nodes, dtype=jnp.int32)

    try:
        out = jax.block_until_ready(
            graph_directed_a(idx, e1_w, e2_w, w1, b1, w2, b2,
                             alpha=alpha, k=k, single_buffer_invariants=True))
    except Exception:
        # Fallback if this jax version rejects pipeline_mode=pl.Buffered(1).
        out = jax.block_until_ready(
            graph_directed_a(idx, e1_w, e2_w, w1, b1, w2, b2,
                             alpha=alpha, k=k, single_buffer_invariants=False))

    # Pure-JAX reference mirroring the kernel's bf16 MXU operands and folded alpha
    # (top-k only zeroes entries, so every surviving positive entry must match).
    bf = lambda a: a.astype(jnp.bfloat16).astype(jnp.float32)
    x1r, x2r = bf(e1_w[idx]), bf(e2_w[idx])
    w1r, w2r = bf(alpha * w1), bf(alpha * w2)
    m1 = jnp.tanh(x1r @ w1r.T + alpha * b1)
    m2 = jnp.tanh(x2r @ w2r.T + alpha * b2)
    ref = jnp.maximum(jnp.tanh(alpha * (bf(m1) @ bf(m2).T)), 0.0)

    assert out.shape == (num_nodes, num_nodes)
    assert bool(jnp.all(jnp.isfinite(out)))
    assert bool(jnp.all(jnp.where(out > 0, jnp.abs(out - ref), 0.0) < 2e-2))
    assert bool(jnp.all(jnp.sum((out > 0).astype(jnp.int32), axis=1) <= k))

    print("KERNEL_OK")
</pallas_src>

<mosaic_0001>
module attributes {stable_mosaic.version = 11 : i64} {
  func.func @_m2t_kernel(%arg0: i32, %arg1: memref<128x128xbf16, #tpu.memory_space<vmem>>, %arg2: memref<128x128xbf16, #tpu.memory_space<vmem>>, %arg3: memref<128x1xf32, #tpu.memory_space<vmem>>, %arg4: memref<128x128xbf16, #tpu.memory_space<vmem>>) attributes {dimension_semantics = [#tpu.dimension_semantics<parallel>], iteration_bounds = array<i64: 1>, scalar_prefetch = 0 : i64, scratch_operands = 0 : i64, tpu.core_type = #tpu.core_type<tc>, window_params = [{transform_indices = @transform_0, window_bounds = array<i64: 128, 128>}, {pipeline_mode = #tpu.pipeline_mode<synchronous>, transform_indices = @transform_1, window_bounds = array<i64: 128, 128>}, {pipeline_mode = #tpu.pipeline_mode<synchronous>, transform_indices = @transform_2, window_bounds = array<i64: 128, 1>}, {transform_indices = @transform_3, window_bounds = array<i64: 128, 128>}]} {
    %c0 = arith.constant 0 : index
    %c0_0 = arith.constant 0 : index
    %0 = vector.load %arg2[%c0, %c0_0] : memref<128x128xbf16, #tpu.memory_space<vmem>>, vector<128x128xbf16>
    %c0_1 = arith.constant 0 : index
    %c0_2 = arith.constant 0 : index
    %1 = vector.load %arg1[%c0_1, %c0_2] : memref<128x128xbf16, #tpu.memory_space<vmem>>, vector<128x128xbf16>
    %cst = arith.constant dense<0.000000e+00> : vector<128x128xf32>
    %2 = tpu.matmul %0, %1, %cst {dimension_numbers = #tpu.dot_dimension_numbers<[1], [0], [0], [1], [0, 0, 1, 1], [], []>} : vector<128x128xbf16>, vector<128x128xbf16>, vector<128x128xf32> -> vector<128x128xf32>
    %c0_3 = arith.constant 0 : index
    %c0_4 = arith.constant 0 : index
    %3 = vector.load %arg3[%c0_3, %c0_4] : memref<128x1xf32, #tpu.memory_space<vmem>>, vector<128x1xf32>
    %4 = vector.broadcast %3 : vector<128x1xf32> to vector<128x128xf32>
    %5 = arith.addf %2, %4 : vector<128x128xf32>
    %6 = math.tanh %5 : vector<128x128xf32>
    %7 = arith.truncf %6 : vector<128x128xf32> to vector<128x128xbf16>
    %c0_5 = arith.constant 0 : index
    %c0_6 = arith.constant 0 : index
    %8 = vector.load %arg4[%c0_5, %c0_6] : memref<128x128xbf16, #tpu.memory_space<vmem>>, vector<128x128xbf16>
    tpu.vector_store %arg4[%c0_5, %c0_6], %7 {strides = array<i32>} : memref<128x128xbf16, #tpu.memory_space<vmem>>, vector<128x128xbf16>,
    return
  }
  func.func @transform_0(%arg0: i32) -> (i32, i32) {
    %c0_i32 = arith.constant 0 : i32
    %c0_i32_0 = arith.constant 0 : i32
    return %c0_i32, %arg0 : i32, i32
  }
  func.func @transform_1(%arg0: i32) -> (i32, i32) {
    %c0_i32 = arith.constant 0 : i32
    %c0_i32_0 = arith.constant 0 : i32
    %c0_i32_1 = arith.constant 0 : i32
    return %c0_i32, %c0_i32_0 : i32, i32
  }
  func.func @transform_2(%arg0: i32) -> (i32, i32) {
    %c0_i32 = arith.constant 0 : i32
    %c0_i32_0 = arith.constant 0 : i32
    %c0_i32_1 = arith.constant 0 : i32
    return %c0_i32, %c0_i32_0 : i32, i32
  }
  func.func @transform_3(%arg0: i32) -> (i32, i32) {
    %c0_i32 = arith.constant 0 : i32
    %c0_i32_0 = arith.constant 0 : i32
    return %c0_i32, %arg0 : i32, i32
  }
}

module attributes {stable_mosaic.version = 11 : i64} {
  func.func @_m2t_kernel(%arg0: i32, %arg1: memref<128x128xbf16, #tpu.memory_space<vmem>>, %arg2: memref<128x128xbf16, #tpu.memory_space<vmem>>, %arg3: memref<128x1xf32, #tpu.memory_space<vmem>>, %arg4: memref<128x128xbf16, #tpu.memory_space<vmem>>) attributes {dimension_semantics = [#tpu.dimension_semantics<parallel>], iteration_bounds = array<i64: 1>, scalar_prefetch = 0 : i64, scratch_operands = 0 : i64, tpu.core_type = #tpu.core_type<tc>, window_params = [{transform_indices = @transform_0, window_bounds = array<i64: 128, 128>}, {pipeline_mode = #tpu.pipeline_mode<synchronous>, transform_indices = @transform_1, window_bounds = array<i64: 128, 128>}, {pipeline_mode = #tpu.pipeline_mode<synchronous>, transform_indices = @transform_2, window_bounds = array<i64: 128, 1>}, {transform_indices = @transform_3, window_bounds = array<i64: 128, 128>}]} {
    %c0 = arith.constant 0 : index
    %c0_0 = arith.constant 0 : index
    %0 = vector.load %arg2[%c0, %c0_0] : memref<128x128xbf16, #tpu.memory_space<vmem>>, vector<128x128xbf16>
    %c0_1 = arith.constant 0 : index
    %c0_2 = arith.constant 0 : index
    %1 = vector.load %arg1[%c0_1, %c0_2] : memref<128x128xbf16, #tpu.memory_space<vmem>>, vector<128x128xbf16>
    %cst = arith.constant dense<0.000000e+00> : vector<128x128xf32>
    %2 = tpu.matmul %0, %1, %cst {dimension_numbers = #tpu.dot_dimension_numbers<[1], [0], [0], [1], [0, 0, 1, 1], [], []>} : vector<128x128xbf16>, vector<128x128xbf16>, vector<128x128xf32> -> vector<128x128xf32>
    %c0_3 = arith.constant 0 : index
    %c0_4 = arith.constant 0 : index
    %3 = vector.load %arg3[%c0_3, %c0_4] : memref<128x1xf32, #tpu.memory_space<vmem>>, vector<128x1xf32>
    %4 = vector.broadcast %3 : vector<128x1xf32> to vector<128x128xf32>
    %5 = arith.addf %2, %4 : vector<128x128xf32>
    %6 = math.tanh %5 : vector<128x128xf32>
    %7 = arith.truncf %6 : vector<128x128xf32> to vector<128x128xbf16>
    %c0_5 = arith.constant 0 : index
    %c0_6 = arith.constant 0 : index
    %8 = vector.load %arg4[%c0_5, %c0_6] : memref<128x128xbf16, #tpu.memory_space<vmem>>, vector<128x128xbf16>
    tpu.vector_store %arg4[%c0_5, %c0_6], %7 {strides = array<i32>} : memref<128x128xbf16, #tpu.memory_space<vmem>>, vector<128x128xbf16>,
    return
  }
  func.func @transform_0(%arg0: i32) -> (i32, i32) {
    %c0_i32 = arith.constant 0 : i32
    %c0_i32_0 = arith.constant 0 : i32
    return %c0_i32, %arg0 : i32, i32
  }
  func.func @transform_1(%arg0: i32) -> (i32, i32) {
    %c0_i32 = arith.constant 0 : i32
    %c0_i32_0 = arith.constant 0 : i32
    %c0_i32_1 = arith.constant 0 : i32
    return %c0_i32, %c0_i32_0 : i32, i32
  }
  func.func @transform_2(%arg0: i32) -> (i32, i32) {
    %c0_i32 = arith.constant 0 : i32
    %c0_i32_0 = arith.constant 0 : i32
    %c0_i32_1 = arith.constant 0 : i32
    return %c0_i32, %c0_i32_0 : i32, i32
  }
  func.func @transform_3(%arg0: i32) -> (i32, i32) {
    %c0_i32 = arith.constant 0 : i32
    %c0_i32_0 = arith.constant 0 : i32
    return %c0_i32, %arg0 : i32, i32
  }
}

</mosaic_0001>

<llo_original>
// kernel: tpu_custom_call.1
$region0: #{tpu_custom_call.1}
  #allocation0 [shape = 'u32[]', space=smem, size = 0x4, offset = 0x4, fixed_abs, tag = 'smem constant byte address 0x4 - core index']
  #allocation1 [shape = 'u32[72,128]{1,0:T(1,128)}', space=vmem, size = 0x9000, scoped, tag = 'internal scratch']
  %s0 = inlined_call_operand.vmem [shape: bf16[128,128], index: 0, kind: input, shape index: {}]
  %s1 = inlined_call_operand.vmem [shape: bf16[128,128], index: 1, kind: input, shape index: {}]
  %s2 = inlined_call_operand.vmem [shape: f32[128,1], index: 2, kind: input, shape index: {}]
  %s3 = inlined_call_operand.hbm [shape: bf16[128,128], index: 3, kind: output, shape index: {}]
  %s4 = sld [smem:[#allocation0]]
  $region22: #{tpu_custom_call.1} parent=0
    _
  %s6 = ssub.s32 1, %s4
  %s7 = scalar_select 0, %s6, %s4
  $region1: #{tpu_custom_call.1} parent=0
    #allocation2 [shape = 'u8[32768]{0}', space=vmem, size = 0x8000, scoped, tag = 'output window, operand 0, single buffered']
    #allocation3 [shape = 's32[1]{0}', space=sflag, size = 0x4, scoped, tag = 'scoped memory for tpu_custom_call.1']
    %8 = vsyncpa [#allocation3], 0
    // Predicated region
    $region2: #{tpu_custom_call.1} parent=1 // pred_check
      _
    $region3: #{tpu_custom_call.1} parent=1 // pred_check_branch
      %10 = sbr.rel (0) target = $region5
    $region4: #{tpu_custom_call.1} parent=1 // pred_region
      _
    $region5: #{tpu_custom_call.1} parent=1 // pred_fallthru
      _
    // Predicated region
    $region6: #{tpu_custom_call.1} parent=1 // pred_check
      _
    $region7: #{tpu_custom_call.1} parent=1 // pred_check_branch
      %12 = sbr.rel (0) target = $region9
    $region8: #{tpu_custom_call.1} parent=1 // pred_region
      _
    $region9: #{tpu_custom_call.1} parent=1 // pred_fallthru
      _
    // Predicated region
    $region10: #{tpu_custom_call.1} parent=1 // pred_check
      _
    $region11: #{tpu_custom_call.1} parent=1 // pred_check_branch
      %14 = sbr.rel (0) target = $region13
    $region12: #{tpu_custom_call.1} parent=1 // pred_region
      _
    $region13: #{tpu_custom_call.1} parent=1 // pred_fallthru
      _
    %v15 = vld [vmem:[%s1] sm:$0xf]
    %v16 = vld [vmem:[%s1 + $0x4] sm:$0xf]
    %v17 = vld [vmem:[%s1 + $0x8] sm:$0xf]
    %v18 = vld [vmem:[%s1 + $0xc] sm:$0xf]
    %v19 = vld [vmem:[%s1 + $0x10] sm:$0xf]
    %v20 = vld [vmem:[%s1 + $0x14] sm:$0xf]
    %v21 = vld [vmem:[%s1 + $0x18] sm:$0xf]
    %v22 = vld [vmem:[%s1 + $0x1c] sm:$0xf]
    %v23 = vld [vmem:[%s1 + $0x20] sm:$0xf]
    %v24 = vld [vmem:[%s1 + $0x24] sm:$0xf]
    %v25 = vld [vmem:[%s1 + $0x28] sm:$0xf]
    %v26 = vld [vmem:[%s1 + $0x2c] sm:$0xf]
    %v27 = vld [vmem:[%s1 + $0x30] sm:$0xf]
    %v28 = vld [vmem:[%s1 + $0x34] sm:$0xf]
    %v29 = vld [vmem:[%s1 + $0x38] sm:$0xf]
    %v30 = vld [vmem:[%s1 + $0x3c] sm:$0xf]
    %v31 = vld [vmem:[%s0] sm:$0xf]
    %v32 = vld [vmem:[%s0 + $0x4] sm:$0xf]
    %v33 = vld [vmem:[%s0 + $0x8] sm:$0xf]
    %v34 = vld [vmem:[%s0 + $0xc] sm:$0xf]
    %v35 = vld [vmem:[%s0 + $0x10] sm:$0xf]
    %v36 = vld [vmem:[%s0 + $0x14] sm:$0xf]
    %v37 = vld [vmem:[%s0 + $0x18] sm:$0xf]
    %v38 = vld [vmem:[%s0 + $0x1c] sm:$0xf]
    %v39 = vld [vmem:[%s0 + $0x20] sm:$0xf]
    %v40 = vld [vmem:[%s0 + $0x24] sm:$0xf]
    %v41 = vld [vmem:[%s0 + $0x28] sm:$0xf]
    %v42 = vld [vmem:[%s0 + $0x2c] sm:$0xf]
    %v43 = vld [vmem:[%s0 + $0x30] sm:$0xf]
    %v44 = vld [vmem:[%s0 + $0x34] sm:$0xf]
    %v45 = vld [vmem:[%s0 + $0x38] sm:$0xf]
    %v46 = vld [vmem:[%s0 + $0x3c] sm:$0xf]
    %v47 = vld [vmem:[%s2] sm:$0xff]
    %v48 = vld [vmem:[%s2 + $0x8] sm:$0xff]
    %v49 = vld [vmem:[%s2 + $0x10] sm:$0xff]
    %v50 = vld [vmem:[%s2 + $0x18] sm:$0xff]
    %v51 = vld [vmem:[%s2 + $0x20] sm:$0xff]
    %v52 = vld [vmem:[%s2 + $0x28] sm:$0xff]
    %v53 = vld [vmem:[%s2 + $0x30] sm:$0xff]
    %v54 = vld [vmem:[%s2 + $0x38] sm:$0xff]
    %v55 = vld [vmem:[%s2 + $0x40] sm:$0xff]
    %v56 = vld [vmem:[%s2 + $0x48] sm:$0xff]
    %v57 = vld [vmem:[%s2 + $0x50] sm:$0xff]
    %v58 = vld [vmem:[%s2 + $0x58] sm:$0xff]
    %v59 = vld [vmem:[%s2 + $0x60] sm:$0xff]
    %v60 = vld [vmem:[%s2 + $0x68] sm:$0xff]
    %v61 = vld [vmem:[%s2 + $0x70] sm:$0xff]
    %v62 = vld [vmem:[%s2 + $0x78] sm:$0xff]
    %64 = vset.pattern.permute.xlu0 0
    %65 = vperm.xlu0 %64, %v47
    %v66 = vpop.permute.xlu0 %65
    %69 = vset.pattern.permute.xlu0 0
    %70 = vperm.xlu0 %69, %v48
    %v71 = vpop.permute.xlu0 %70
    %74 = vset.pattern.permute.xlu0 0
    %75 = vperm.xlu0 %74, %v49
    %v76 = vpop.permute.xlu0 %75
    %79 = vset.pattern.permute.xlu0 0
    %80 = vperm.xlu0 %79, %v50
    %v81 = vpop.permute.xlu0 %80
    %84 = vset.pattern.permute.xlu0 0
    %85 = vperm.xlu0 %84, %v51
    %v86 = vpop.permute.xlu0 %85
    %89 = vset.pattern.permute.xlu0 0
    %90 = vperm.xlu0 %89, %v52
    %v91 = vpop.permute.xlu0 %90
    %94 = vset.pattern.permute.xlu0 0
    %95 = vperm.xlu0 %94, %v53
    %v96 = vpop.permute.xlu0 %95
    %99 = vset.pattern.permute.xlu0 0
    %100 = vperm.xlu0 %99, %v54
    %v101 = vpop.permute.xlu0 %100
    %104 = vset.pattern.permute.xlu0 0
    %105 = vperm.xlu0 %104, %v55
    %v106 = vpop.permute.xlu0 %105
    %109 = vset.pattern.permute.xlu0 0
    %110 = vperm.xlu0 %109, %v56
    %v111 = vpop.permute.xlu0 %110
    %114 = vset.pattern.permute.xlu0 0
    %115 = vperm.xlu0 %114, %v57
    %v116 = vpop.permute.xlu0 %115
    %119 = vset.pattern.permute.xlu0 0
    %120 = vperm.xlu0 %119, %v58
    %v121 = vpop.permute.xlu0 %120
    %124 = vset.pattern.permute.xlu0 0
    %125 = vperm.xlu0 %124, %v59
    %v126 = vpop.permute.xlu0 %125
    %129 = vset.pattern.permute.xlu0 0
    %130 = vperm.xlu0 %129, %v60
    %v131 = vpop.permute.xlu0 %130
    %134 = vset.pattern.permute.xlu0 0
    %135 = vperm.xlu0 %134, %v61
    %v136 = vpop.permute.xlu0 %135
    %139 = vset.pattern.permute.xlu0 0
    %140 = vperm.xlu0 %139, %v62
    %v141 = vpop.permute.xlu0 %140
    %v159 = vunpack.c.l.b16 %v15
    %v160 = vunpack.c.l.b16 %v16
    %v161 = vunpack.c.l.b16 %v17
    %v162 = vunpack.c.l.b16 %v18
    %v163 = vunpack.c.l.b16 %v19
    %v164 = vunpack.c.l.b16 %v20
    %v165 = vunpack.c.l.b16 %v21
    %v166 = vunpack.c.l.b16 %v22
    %v167 = vunpack.c.l.b16 %v23
    %v168 = vunpack.c.l.b16 %v24
    %v169 = vunpack.c.l.b16 %v25
    %v170 = vunpack.c.l.b16 %v26
    %v171 = vunpack.c.l.b16 %v27
    %v172 = vunpack.c.l.b16 %v28
    %v173 = vunpack.c.l.b16 %v29
    %v174 = vunpack.c.l.b16 %v30
    %v175 = vpack.c.b16 %v160, %v159
    %v176 = vpack.c.b16 %v162, %v161
    %v177 = vpack.c.b16 %v164, %v163
    %v178 = vpack.c.b16 %v166, %v165
    %v179 = vpack.c.b16 %v168, %v167
    %v180 = vpack.c.b16 %v170, %v169
    %v181 = vpack.c.b16 %v172, %v171
    %v182 = vpack.c.b16 %v174, %v173
    %v207 = vunpack.c.l.b16 %v31
    %v208 = vunpack.c.l.b16 %v32
    %v209 = vunpack.c.l.b16 %v33
    %v210 = vunpack.c.l.b16 %v34
    %v211 = vunpack.c.l.b16 %v35
    %v212 = vunpack.c.l.b16 %v36
    %v213 = vunpack.c.l.b16 %v37
    %v214 = vunpack.c.l.b16 %v38
    %v215 = vunpack.c.l.b16 %v39
    %v216 = vunpack.c.l.b16 %v40
    %v217 = vunpack.c.l.b16 %v41
    %v218 = vunpack.c.l.b16 %v42
    %v219 = vunpack.c.l.b16 %v43
    %v220 = vunpack.c.l.b16 %v44
    %v221 = vunpack.c.l.b16 %v45
    %v222 = vunpack.c.l.b16 %v46
    %v223 = vpack.c.b16 %v208, %v207
    %v224 = vpack.c.b16 %v210, %v209
    %v225 = vpack.c.b16 %v212, %v211
    %v226 = vpack.c.b16 %v214, %v213
    %v227 = vpack.c.b16 %v216, %v215
    %v228 = vpack.c.b16 %v218, %v217
    %v229 = vpack.c.b16 %v220, %v219
    %v230 = vpack.c.b16 %v222, %v221
    %239 = vmatpush.bf16.msra.mxu0 %v230
    %240 = vmatpush.bf16.msra.mxu0 %v229
    %241 = vmatpush.bf16.msra.mxu0 %v228
    %242 = vmatpush.bf16.msra.mxu0 %v227
    %243 = vmatpush.bf16.msra.mxu0 %v226
    %244 = vmatpush.bf16.msra.mxu0 %v225
    %245 = vmatpush.bf16.msra.mxu0 %v224
    %246 = vmatpush.bf16.msra.mxu0 %v223
    %247 = vmatmul.bf16.gmra.mxu0 %v175
    %v248 = vpop.f32.mrf.mxu0
    %v249 = vadd.f32 %v66, %v248
    %v250 = vpop.f32.mrf.mxu0
    %v251 = vadd.f32 %v71, %v250
    %252 = vmatmul.bf16.gmra.mxu0 %v176
    %v253 = vpop.f32.mrf.mxu0
    %v254 = vadd.f32 %v76, %v253
    %v255 = vpop.f32.mrf.mxu0
    %v256 = vadd.f32 %v81, %v255
    %257 = vmatmul.bf16.gmra.mxu0 %v177
    %v258 = vpop.f32.mrf.mxu0
    %v259 = vadd.f32 %v86, %v258
    %v260 = vpop.f32.mrf.mxu0
    %v261 = vadd.f32 %v91, %v260
    %262 = vmatmul.bf16.gmra.mxu0 %v178
    %v263 = vpop.f32.mrf.mxu0
    %v264 = vadd.f32 %v96, %v263
    %v265 = vpop.f32.mrf.mxu0
    %v266 = vadd.f32 %v101, %v265
    %267 = vmatmul.bf16.gmra.mxu0 %v179
    %v268 = vpop.f32.mrf.mxu0
    %v269 = vadd.f32 %v106, %v268
    %v270 = vpop.f32.mrf.mxu0
    %v271 = vadd.f32 %v111, %v270
    %272 = vmatmul.bf16.gmra.mxu0 %v180
    %v273 = vpop.f32.mrf.mxu0
    %v274 = vadd.f32 %v116, %v273
    %v275 = vpop.f32.mrf.mxu0
    %v276 = vadd.f32 %v121, %v275
    %277 = vmatmul.bf16.gmra.mxu0 %v181
    %v278 = vpop.f32.mrf.mxu0
    %v279 = vadd.f32 %v126, %v278
    %v280 = vpop.f32.mrf.mxu0
    %v281 = vadd.f32 %v131, %v280
    %282 = vmatmul.bf16.gmra.mxu0 %v182
    %v283 = vpop.f32.mrf.mxu0
    %v284 = vadd.f32 %v136, %v283
    %v285 = vpop.f32.mrf.mxu0
    %v286 = vadd.f32 %v141, %v285
    %287 = vdwg.mxu0
    %v288 = vtanh.pop %v249
    %v289 = vtanh.pop %v251
    %v290 = vtanh.pop %v254
    %v291 = vtanh.pop %v256
    %v292 = vtanh.pop %v259
    %v293 = vtanh.pop %v261
    %v294 = vtanh.pop %v264
    %v295 = vtanh.pop %v266
    %v296 = vtanh.pop %v269
    %v297 = vtanh.pop %v271
    %v298 = vtanh.pop %v274
    %v299 = vtanh.pop %v276
    %v300 = vtanh.pop %v279
    %v301 = vtanh.pop %v281
    %v302 = vtanh.pop %v284
    %v303 = vtanh.pop %v286
    %v304 = vpack.c.bf16 %v288, %v288
    %v305 = vpack.c.bf16 %v289, %v289
    %v306 = vpack.c.bf16 %v290, %v290
    %v307 = vpack.c.bf16 %v291, %v291
    %v308 = vpack.c.bf16 %v292, %v292
    %v309 = vpack.c.bf16 %v293, %v293
    %v310 = vpack.c.bf16 %v294, %v294
    %v311 = vpack.c.bf16 %v295, %v295
    %v312 = vpack.c.bf16 %v296, %v296
    %v313 = vpack.c.bf16 %v297, %v297
    %v314 = vpack.c.bf16 %v298, %v298
    %v315 = vpack.c.bf16 %v299, %v299
    %v316 = vpack.c.bf16 %v300, %v300
    %v317 = vpack.c.bf16 %v301, %v301
    %v318 = vpack.c.bf16 %v302, %v302
    %v319 = vpack.c.bf16 %v303, %v303
    %320 = vst [vmem:[#allocation2] sm:$0xf] %v304
    %321 = vst [vmem:[#allocation2 + $0x4] sm:$0xf] %v305
    %322 = vst [vmem:[#allocation2 + $0x8] sm:$0xf] %v306
    %323 = vst [vmem:[#allocation2 + $0xc] sm:$0xf] %v307
    %324 = vst [vmem:[#allocation2 + $0x10] sm:$0xf] %v308
    %325 = vst [vmem:[#allocation2 + $0x14] sm:$0xf] %v309
    %326 = vst [vmem:[#allocation2 + $0x18] sm:$0xf] %v310
    %327 = vst [vmem:[#allocation2 + $0x1c] sm:$0xf] %v311
    %328 = vst [vmem:[#allocation2 + $0x20] sm:$0xf] %v312
    %329 = vst [vmem:[#allocation2 + $0x24] sm:$0xf] %v313
    %330 = vst [vmem:[#allocation2 + $0x28] sm:$0xf] %v314
    %331 = vst [vmem:[#allocation2 + $0x2c] sm:$0xf] %v315
    %332 = vst [vmem:[#allocation2 + $0x30] sm:$0xf] %v316
    %333 = vst [vmem:[#allocation2 + $0x34] sm:$0xf] %v317
    %334 = vst [vmem:[#allocation2 + $0x38] sm:$0xf] %v318
    %335 = vst [vmem:[#allocation2 + $0x3c] sm:$0xf] %v319
    // Predicated region
    $region14: #{tpu_custom_call.1} parent=1 // pred_check
      _
    $region15: #{tpu_custom_call.1} parent=1 // pred_check_branch
      %337 = sbr.rel (0) target = $region17
    $region16: #{tpu_custom_call.1} parent=1 // pred_region
      %339 = vsyncadd [#allocation3], 0
      %s340 = sshll.u32 [#allocation2], 4
      %s341 = int_to_ptr.vmem [resolvable:$true] %s340
      %s342 = sshll.u32 %s3, 4
      %s343 = int_to_ptr.hbm [resolvable:$true] %s342
      %348 = dma.vmem_to_hbm [thread:$0]  %s341, 1024, %s343, [#allocation3], 64, 64, 4
    $region17: #{tpu_custom_call.1} parent=1 // pred_fallthru
      _
    // Predicated region
    $region18: #{tpu_custom_call.1} parent=1 // pred_check
      _
    $region19: #{tpu_custom_call.1} parent=1 // pred_check_branch
      %350 = sbr.rel (0) target = $region21
    $region20: #{tpu_custom_call.1} parent=1 // pred_region
      %352 = dma.done [#allocation3], 1024
    $region21: #{tpu_custom_call.1} parent=1 // pred_fallthru
      _
    %353 = vsyncpa [#allocation3], 1

// kernel: tpu_custom_call.1
$region0: #{tpu_custom_call.1}
  #allocation0 [shape = 'u32[]', space=smem, size = 0x4, offset = 0x4, fixed_abs, tag = 'smem constant byte address 0x4 - core index']
  #allocation1 [shape = 'u32[72,128]{1,0:T(1,128)}', space=vmem, size = 0x9000, scoped, tag = 'internal scratch']
  %s0 = inlined_call_operand.vmem [shape: bf16[128,128], index: 0, kind: input, shape index: {}]
  %s1 = inlined_call_operand.vmem [shape: bf16[128,128], index: 1, kind: input, shape index: {}]
  %s2 = inlined_call_operand.vmem [shape: f32[128,1], index: 2, kind: input, shape index: {}]
  %s3 = inlined_call_operand.hbm [shape: bf16[128,128], index: 3, kind: output, shape index: {}]
  %s4 = sld [smem:[#allocation0]]
  $region22: #{tpu_custom_call.1} parent=0
    _
  %s6 = ssub.s32 1, %s4
  %s7 = scalar_select 0, %s6, %s4
  $region1: #{tpu_custom_call.1} parent=0
    #allocation2 [shape = 'u8[32768]{0}', space=vmem, size = 0x8000, scoped, tag = 'output window, operand 0, single buffered']
    #allocation3 [shape = 's32[1]{0}', space=sflag, size = 0x4, scoped, tag = 'scoped memory for tpu_custom_call.1']
    %8 = vsyncpa [#allocation3], 0
    // Predicated region
    $region2: #{tpu_custom_call.1} parent=1 // pred_check
      _
    $region3: #{tpu_custom_call.1} parent=1 // pred_check_branch
      %10 = sbr.rel (0) target = $region5
    $region4: #{tpu_custom_call.1} parent=1 // pred_region
      _
    $region5: #{tpu_custom_call.1} parent=1 // pred_fallthru
      _
    // Predicated region
    $region6: #{tpu_custom_call.1} parent=1 // pred_check
      _
    $region7: #{tpu_custom_call.1} parent=1 // pred_check_branch
      %12 = sbr.rel (0) target = $region9
    $region8: #{tpu_custom_call.1} parent=1 // pred_region
      _
    $region9: #{tpu_custom_call.1} parent=1 // pred_fallthru
      _
    // Predicated region
    $region10: #{tpu_custom_call.1} parent=1 // pred_check
      _
    $region11: #{tpu_custom_call.1} parent=1 // pred_check_branch
      %14 = sbr.rel (0) target = $region13
    $region12: #{tpu_custom_call.1} parent=1 // pred_region
      _
    $region13: #{tpu_custom_call.1} parent=1 // pred_fallthru
      _
    %v15 = vld [vmem:[%s1] sm:$0xf]
    %v16 = vld [vmem:[%s1 + $0x4] sm:$0xf]
    %v17 = vld [vmem:[%s1 + $0x8] sm:$0xf]
    %v18 = vld [vmem:[%s1 + $0xc] sm:$0xf]
    %v19 = vld [vmem:[%s1 + $0x10] sm:$0xf]
    %v20 = vld [vmem:[%s1 + $0x14] sm:$0xf]
    %v21 = vld [vmem:[%s1 + $0x18] sm:$0xf]
    %v22 = vld [vmem:[%s1 + $0x1c] sm:$0xf]
    %v23 = vld [vmem:[%s1 + $0x20] sm:$0xf]
    %v24 = vld [vmem:[%s1 + $0x24] sm:$0xf]
    %v25 = vld [vmem:[%s1 + $0x28] sm:$0xf]
    %v26 = vld [vmem:[%s1 + $0x2c] sm:$0xf]
    %v27 = vld [vmem:[%s1 + $0x30] sm:$0xf]
    %v28 = vld [vmem:[%s1 + $0x34] sm:$0xf]
    %v29 = vld [vmem:[%s1 + $0x38] sm:$0xf]
    %v30 = vld [vmem:[%s1 + $0x3c] sm:$0xf]
    %v31 = vld [vmem:[%s0] sm:$0xf]
    %v32 = vld [vmem:[%s0 + $0x4] sm:$0xf]
    %v33 = vld [vmem:[%s0 + $0x8] sm:$0xf]
    %v34 = vld [vmem:[%s0 + $0xc] sm:$0xf]
    %v35 = vld [vmem:[%s0 + $0x10] sm:$0xf]
    %v36 = vld [vmem:[%s0 + $0x14] sm:$0xf]
    %v37 = vld [vmem:[%s0 + $0x18] sm:$0xf]
    %v38 = vld [vmem:[%s0 + $0x1c] sm:$0xf]
    %v39 = vld [vmem:[%s0 + $0x20] sm:$0xf]
    %v40 = vld [vmem:[%s0 + $0x24] sm:$0xf]
    %v41 = vld [vmem:[%s0 + $0x28] sm:$0xf]
    %v42 = vld [vmem:[%s0 + $0x2c] sm:$0xf]
    %v43 = vld [vmem:[%s0 + $0x30] sm:$0xf]
    %v44 = vld [vmem:[%s0 + $0x34] sm:$0xf]
    %v45 = vld [vmem:[%s0 + $0x38] sm:$0xf]
    %v46 = vld [vmem:[%s0 + $0x3c] sm:$0xf]
    %v47 = vld [vmem:[%s2] sm:$0xff]
    %v48 = vld [vmem:[%s2 + $0x8] sm:$0xff]
    %v49 = vld [vmem:[%s2 + $0x10] sm:$0xff]
    %v50 = vld [vmem:[%s2 + $0x18] sm:$0xff]
    %v51 = vld [vmem:[%s2 + $0x20] sm:$0xff]
    %v52 = vld [vmem:[%s2 + $0x28] sm:$0xff]
    %v53 = vld [vmem:[%s2 + $0x30] sm:$0xff]
    %v54 = vld [vmem:[%s2 + $0x38] sm:$0xff]
    %v55 = vld [vmem:[%s2 + $0x40] sm:$0xff]
    %v56 = vld [vmem:[%s2 + $0x48] sm:$0xff]
    %v57 = vld [vmem:[%s2 + $0x50] sm:$0xff]
    %v58 = vld [vmem:[%s2 + $0x58] sm:$0xff]
    %v59 = vld [vmem:[%s2 + $0x60] sm:$0xff]
    %v60 = vld [vmem:[%s2 + $0x68] sm:$0xff]
    %v61 = vld [vmem:[%s2 + $0x70] sm:$0xff]
    %v62 = vld [vmem:[%s2 + $0x78] sm:$0xff]
    %64 = vset.pattern.permute.xlu0 0
    %65 = vperm.xlu0 %64, %v47
    %v66 = vpop.permute.xlu0 %65
    %69 = vset.pattern.permute.xlu0 0
    %70 = vperm.xlu0 %69, %v48
    %v71 = vpop.permute.xlu0 %70
    %74 = vset.pattern.permute.xlu0 0
    %75 = vperm.xlu0 %74, %v49
    %v76 = vpop.permute.xlu0 %75
    %79 = vset.pattern.permute.xlu0 0
    %80 = vperm.xlu0 %79, %v50
    %v81 = vpop.permute.xlu0 %80
    %84 = vset.pattern.permute.xlu0 0
    %85 = vperm.xlu0 %84, %v51
    %v86 = vpop.permute.xlu0 %85
    %89 = vset.pattern.permute.xlu0 0
    %90 = vperm.xlu0 %89, %v52
    %v91 = vpop.permute.xlu0 %90
    %94 = vset.pattern.permute.xlu0 0
    %95 = vperm.xlu0 %94, %v53
    %v96 = vpop.permute.xlu0 %95
    %99 = vset.pattern.permute.xlu0 0
    %100 = vperm.xlu0 %99, %v54
    %v101 = vpop.permute.xlu0 %100
    %104 = vset.pattern.permute.xlu0 0
    %105 = vperm.xlu0 %104, %v55
    %v106 = vpop.permute.xlu0 %105
    %109 = vset.pattern.permute.xlu0 0
    %110 = vperm.xlu0 %109, %v56
    %v111 = vpop.permute.xlu0 %110
    %114 = vset.pattern.permute.xlu0 0
    %115 = vperm.xlu0 %114, %v57
    %v116 = vpop.permute.xlu0 %115
    %119 = vset.pattern.permute.xlu0 0
    %120 = vperm.xlu0 %119, %v58
    %v121 = vpop.permute.xlu0 %120
    %124 = vset.pattern.permute.xlu0 0
    %125 = vperm.xlu0 %124, %v59
    %v126 = vpop.permute.xlu0 %125
    %129 = vset.pattern.permute.xlu0 0
    %130 = vperm.xlu0 %129, %v60
    %v131 = vpop.permute.xlu0 %130
    %134 = vset.pattern.permute.xlu0 0
    %135 = vperm.xlu0 %134, %v61
    %v136 = vpop.permute.xlu0 %135
    %139 = vset.pattern.permute.xlu0 0
    %140 = vperm.xlu0 %139, %v62
    %v141 = vpop.permute.xlu0 %140
    %v159 = vunpack.c.l.b16 %v15
    %v160 = vunpack.c.l.b16 %v16
    %v161 = vunpack.c.l.b16 %v17
    %v162 = vunpack.c.l.b16 %v18
    %v163 = vunpack.c.l.b16 %v19
    %v164 = vunpack.c.l.b16 %v20
    %v165 = vunpack.c.l.b16 %v21
    %v166 = vunpack.c.l.b16 %v22
    %v167 = vunpack.c.l.b16 %v23
    %v168 = vunpack.c.l.b16 %v24
    %v169 = vunpack.c.l.b16 %v25
    %v170 = vunpack.c.l.b16 %v26
    %v171 = vunpack.c.l.b16 %v27
    %v172 = vunpack.c.l.b16 %v28
    %v173 = vunpack.c.l.b16 %v29
    %v174 = vunpack.c.l.b16 %v30
    %v175 = vpack.c.b16 %v160, %v159
    %v176 = vpack.c.b16 %v162, %v161
    %v177 = vpack.c.b16 %v164, %v163
    %v178 = vpack.c.b16 %v166, %v165
    %v179 = vpack.c.b16 %v168, %v167
    %v180 = vpack.c.b16 %v170, %v169
    %v181 = vpack.c.b16 %v172, %v171
    %v182 = vpack.c.b16 %v174, %v173
    %v207 = vunpack.c.l.b16 %v31
    %v208 = vunpack.c.l.b16 %v32
    %v209 = vunpack.c.l.b16 %v33
    %v210 = vunpack.c.l.b16 %v34
    %v211 = vunpack.c.l.b16 %v35
    %v212 = vunpack.c.l.b16 %v36
    %v213 = vunpack.c.l.b16 %v37
    %v214 = vunpack.c.l.b16 %v38
    %v215 = vunpack.c.l.b16 %v39
    %v216 = vunpack.c.l.b16 %v40
    %v217 = vunpack.c.l.b16 %v41
    %v218 = vunpack.c.l.b16 %v42
    %v219 = vunpack.c.l.b16 %v43
    %v220 = vunpack.c.l.b16 %v44
    %v221 = vunpack.c.l.b16 %v45
    %v222 = vunpack.c.l.b16 %v46
    %v223 = vpack.c.b16 %v208, %v207
    %v224 = vpack.c.b16 %v210, %v209
    %v225 = vpack.c.b16 %v212, %v211
    %v226 = vpack.c.b16 %v214, %v213
    %v227 = vpack.c.b16 %v216, %v215
    %v228 = vpack.c.b16 %v218, %v217
    %v229 = vpack.c.b16 %v220, %v219
    %v230 = vpack.c.b16 %v222, %v221
    %239 = vmatpush.bf16.msra.mxu0 %v230
    %240 = vmatpush.bf16.msra.mxu0 %v229
    %241 = vmatpush.bf16.msra.mxu0 %v228
    %242 = vmatpush.bf16.msra.mxu0 %v227
    %243 = vmatpush.bf16.msra.mxu0 %v226
    %244 = vmatpush.bf16.msra.mxu0 %v225
    %245 = vmatpush.bf16.msra.mxu0 %v224
    %246 = vmatpush.bf16.msra.mxu0 %v223
    %247 = vmatmul.bf16.gmra.mxu0 %v175
    %v248 = vpop.f32.mrf.mxu0
    %v249 = vadd.f32 %v66, %v248
    %v250 = vpop.f32.mrf.mxu0
    %v251 = vadd.f32 %v71, %v250
    %252 = vmatmul.bf16.gmra.mxu0 %v176
    %v253 = vpop.f32.mrf.mxu0
    %v254 = vadd.f32 %v76, %v253
    %v255 = vpop.f32.mrf.mxu0
    %v256 = vadd.f32 %v81, %v255
    %257 = vmatmul.bf16.gmra.mxu0 %v177
    %v258 = vpop.f32.mrf.mxu0
    %v259 = vadd.f32 %v86, %v258
    %v260 = vpop.f32.mrf.mxu0
    %v261 = vadd.f32 %v91, %v260
    %262 = vmatmul.bf16.gmra.mxu0 %v178
    %v263 = vpop.f32.mrf.mxu0
    %v264 = vadd.f32 %v96, %v263
    %v265 = vpop.f32.mrf.mxu0
    %v266 = vadd.f32 %v101, %v265
    %267 = vmatmul.bf16.gmra.mxu0 %v179
    %v268 = vpop.f32.mrf.mxu0
    %v269 = vadd.f32 %v106, %v268
    %v270 = vpop.f32.mrf.mxu0
    %v271 = vadd.f32 %v111, %v270
    %272 = vmatmul.bf16.gmra.mxu0 %v180
    %v273 = vpop.f32.mrf.mxu0
    %v274 = vadd.f32 %v116, %v273
    %v275 = vpop.f32.mrf.mxu0
    %v276 = vadd.f32 %v121, %v275
    %277 = vmatmul.bf16.gmra.mxu0 %v181
    %v278 = vpop.f32.mrf.mxu0
    %v279 = vadd.f32 %v126, %v278
    %v280 = vpop.f32.mrf.mxu0
    %v281 = vadd.f32 %v131, %v280
    %282 = vmatmul.bf16.gmra.mxu0 %v182
    %v283 = vpop.f32.mrf.mxu0
    %v284 = vadd.f32 %v136, %v283
    %v285 = vpop.f32.mrf.mxu0
    %v286 = vadd.f32 %v141, %v285
    %287 = vdwg.mxu0
    %v288 = vtanh.pop %v249
    %v289 = vtanh.pop %v251
    %v290 = vtanh.pop %v254
    %v291 = vtanh.pop %v256
    %v292 = vtanh.pop %v259
    %v293 = vtanh.pop %v261
    %v294 = vtanh.pop %v264
    %v295 = vtanh.pop %v266
    %v296 = vtanh.pop %v269
    %v297 = vtanh.pop %v271
    %v298 = vtanh.pop %v274
    %v299 = vtanh.pop %v276
    %v300 = vtanh.pop %v279
    %v301 = vtanh.pop %v281
    %v302 = vtanh.pop %v284
    %v303 = vtanh.pop %v286
    %v304 = vpack.c.bf16 %v288, %v288
    %v305 = vpack.c.bf16 %v289, %v289
    %v306 = vpack.c.bf16 %v290, %v290
    %v307 = vpack.c.bf16 %v291, %v291
    %v308 = vpack.c.bf16 %v292, %v292
    %v309 = vpack.c.bf16 %v293, %v293
    %v310 = vpack.c.bf16 %v294, %v294
    %v311 = vpack.c.bf16 %v295, %v295
    %v312 = vpack.c.bf16 %v296, %v296
    %v313 = vpack.c.bf16 %v297, %v297
    %v314 = vpack.c.bf16 %v298, %v298
    %v315 = vpack.c.bf16 %v299, %v299
    %v316 = vpack.c.bf16 %v300, %v300
    %v317 = vpack.c.bf16 %v301, %v301
    %v318 = vpack.c.bf16 %v302, %v302
    %v319 = vpack.c.bf16 %v303, %v303
    %320 = vst [vmem:[#allocation2] sm:$0xf] %v304
    %321 = vst [vmem:[#allocation2 + $0x4] sm:$0xf] %v305
    %322 = vst [vmem:[#allocation2 + $0x8] sm:$0xf] %v306
    %323 = vst [vmem:[#allocation2 + $0xc] sm:$0xf] %v307
    %324 = vst [vmem:[#allocation2 + $0x10] sm:$0xf] %v308
    %325 = vst [vmem:[#allocation2 + $0x14] sm:$0xf] %v309
    %326 = vst [vmem:[#allocation2 + $0x18] sm:$0xf] %v310
    %327 = vst [vmem:[#allocation2 + $0x1c] sm:$0xf] %v311
    %328 = vst [vmem:[#allocation2 + $0x20] sm:$0xf] %v312
    %329 = vst [vmem:[#allocation2 + $0x24] sm:$0xf] %v313
    %330 = vst [vmem:[#allocation2 + $0x28] sm:$0xf] %v314
    %331 = vst [vmem:[#allocation2 + $0x2c] sm:$0xf] %v315
    %332 = vst [vmem:[#allocation2 + $0x30] sm:$0xf] %v316
    %333 = vst [vmem:[#allocation2 + $0x34] sm:$0xf] %v317
    %334 = vst [vmem:[#allocation2 + $0x38] sm:$0xf] %v318
    %335 = vst [vmem:[#allocation2 + $0x3c] sm:$0xf] %v319
    // Predicated region
    $region14: #{tpu_custom_call.1} parent=1 // pred_check
      _
    $region15: #{tpu_custom_call.1} parent=1 // pred_check_branch
      %337 = sbr.rel (0) target = $region17
    $region16: #{tpu_custom_call.1} parent=1 // pred_region
      %339 = vsyncadd [#allocation3], 0
      %s340 = sshll.u32 [#allocation2], 4
      %s341 = int_to_ptr.vmem [resolvable:$true] %s340
      %s342 = sshll.u32 %s3, 4
      %s343 = int_to_ptr.hbm [resolvable:$true] %s342
      %348 = dma.vmem_to_hbm [thread:$0]  %s341, 1024, %s343, [#allocation3], 64, 64, 4
    $region17: #{tpu_custom_call.1} parent=1 // pred_fallthru
      _
    // Predicated region
    $region18: #{tpu_custom_call.1} parent=1 // pred_check
      _
    $region19: #{tpu_custom_call.1} parent=1 // pred_check_branch
      %350 = sbr.rel (0) target = $region21
    $region20: #{tpu_custom_call.1} parent=1 // pred_region
      %352 = dma.done [#allocation3], 1024
    $region21: #{tpu_custom_call.1} parent=1 // pred_fallthru
      _
    %353 = vsyncpa [#allocation3], 1

</llo_original>
